<compile_context>
chip_gen: v5e
topology: v5e:2x2
jax: 0.10.0
libtpu: 0.0.40
codegen_flags: <defaults>
</compile_context>

<pallas_src>
import functools

import jax
import jax.numpy as jnp
from jax.experimental import pallas as pl
from jax.experimental.pallas import tpu as pltpu


def _vmem_capacity_bytes() -> int:
    try:
        return int(pltpu.get_tpu_info().vmem_capacity_bytes)
    except Exception:
        return 128 * 1024 * 1024  # conservative default (v5e/v6e physical VMEM)


def _budgets():
    cap = _vmem_capacity_bytes()
    # Per-buffer block budget: ~8 MiB on 128 MiB parts (v5e/v6e), ~4 MiB on v7x (64 MiB).
    # With default double buffering of input + output, resident blocks ~= 4 * budget.
    block_budget = min(8 * 1024 * 1024, cap // 16)
    vmem_limit = min(cap * 3 // 4, 96 * 1024 * 1024)
    return block_budget, vmem_limit


def _sublane_packing(dtype) -> int:
    itemsize = jnp.dtype(dtype).itemsize
    return {4: 8, 2: 16, 1: 32}.get(itemsize, 8)


def _round_up(n: int, m: int) -> int:
    return ((n + m - 1) // m) * m


def _pick_tile_rows(n_rows: int, hidden: int, dtype, block_budget: int) -> int:
    packing = _sublane_packing(dtype)
    itemsize = jnp.dtype(dtype).itemsize
    row_bytes = max(1, hidden * itemsize)
    target = max(((block_budget // row_bytes) // packing) * packing, packing)
    if n_rows * row_bytes > 1024 * 1024:
        # Guarantee >= ~4 grid steps so both v7x TensorCores get work and the
        # pipeline has DMA-in / compute / writeback to overlap.
        quarter = _round_up(max(1, -(-n_rows // 4)), packing)
        target = min(target, max(quarter, packing))
    if n_rows <= target:
        return n_rows  # single block covering all rows (block dim == array dim is legal)
    return target


# ---------------------------------------------------------------------------
# Single-pass kernel: whole hidden axis resident per row tile.
# ---------------------------------------------------------------------------
def _scale_norm_kernel(scalar_ref, x_ref, o_ref, *, eps):
    # scalar_ref: (1, 1) f32 in SMEM; x_ref/o_ref: (tile_rows, hidden) in VMEM.
    xf = x_ref[...].astype(jnp.float32)
    mean_square = jnp.mean(xf * xf, axis=-1, keepdims=True)           # (rows, 1) f32
    inv = scalar_ref[0, 0] * jax.lax.rsqrt(mean_square + eps)         # fold scalar in
    o_ref[...] = (xf * inv).astype(o_ref.dtype)                       # multiply in f32


# ---------------------------------------------------------------------------
# Two-pass path for very large hidden (hidden axis tiled).
# ---------------------------------------------------------------------------
def _sumsq_kernel(x_ref, ssq_ref, *, hidden, tile_hidden, mask_needed):
    k = pl.program_id(1)

    @pl.when(k == 0)
    def _():
        ssq_ref[...] = jnp.zeros_like(ssq_ref)

    xf = x_ref[...].astype(jnp.float32)
    if mask_needed:  # ragged last hidden block: zero out-of-range lanes
        col = k * tile_hidden + jax.lax.broadcasted_iota(jnp.int32, xf.shape, 1)
        xf = jnp.where(col < hidden, xf, 0.0)
    ssq_ref[...] += jnp.sum(xf * xf, axis=-1, keepdims=True)


def _apply_kernel(scalar_ref, ssq_ref, x_ref, o_ref, *, eps, hidden):
    inv = scalar_ref[0, 0] * jax.lax.rsqrt(ssq_ref[...] / hidden + eps)
    o_ref[...] = (x_ref[...].astype(jnp.float32) * inv).astype(o_ref.dtype)


def _scale_norm_two_pass(x2d, s, eps, block_budget, vmem_limit,
                         tile_rows=None, tile_hidden=None):
    n_rows, hidden = x2d.shape
    dtype = x2d.dtype
    packing = _sublane_packing(dtype)
    itemsize = jnp.dtype(dtype).itemsize

    if tile_rows is None:
        tile_rows = min(n_rows, packing)
    if tile_hidden is None:
        tile_hidden = max(128, ((block_budget // (tile_rows * itemsize)) // 128) * 128)
        tile_hidden = min(tile_hidden, _round_up(hidden, 128))

    n_row_blocks = pl.cdiv(n_rows, tile_rows)
    n_hid_blocks = pl.cdiv(hidden, tile_hidden)
    mask_needed = (hidden % tile_hidden) != 0
    grid = (n_row_blocks, n_hid_blocks)

    # Pass 1: per-row sum of squares, hidden axis is the (resident-output) reduction.
    ssq = pl.pallas_call(
        functools.partial(_sumsq_kernel, hidden=hidden, tile_hidden=tile_hidden,
                          mask_needed=mask_needed),
        out_shape=jax.ShapeDtypeStruct((n_rows, 1), jnp.float32),
        grid_spec=pl.GridSpec(
            grid=grid,
            in_specs=[pl.BlockSpec((tile_rows, tile_hidden), lambda i, k: (i, k))],
            out_specs=pl.BlockSpec((tile_rows, 1), lambda i, k: (i, 0)),
        ),
        compiler_params=pltpu.CompilerParams(
            dimension_semantics=("parallel", "arbitrary"),
            vmem_limit_bytes=vmem_limit,
        ),
        cost_estimate=pl.CostEstimate(
            flops=2 * x2d.size, transcendentals=0,
            bytes_accessed=x2d.size * itemsize + 4 * n_rows),
    )(x2d)

    # Pass 2: apply scalar * rsqrt(mean_square + eps).
    out = pl.pallas_call(
        functools.partial(_apply_kernel, eps=float(eps), hidden=float(hidden)),
        out_shape=jax.ShapeDtypeStruct((n_rows, hidden), dtype),
        grid_spec=pl.GridSpec(
            grid=grid,
            in_specs=[
                pl.BlockSpec(memory_space=pltpu.MemorySpace.SMEM),                 # scalar
                pl.BlockSpec((tile_rows, 1), lambda i, k: (i, 0)),                 # ssq
                pl.BlockSpec((tile_rows, tile_hidden), lambda i, k: (i, k)),       # x
            ],
            out_specs=pl.BlockSpec((tile_rows, tile_hidden), lambda i, k: (i, k)),
        ),
        compiler_params=pltpu.CompilerParams(
            dimension_semantics=("parallel", "parallel"),
            vmem_limit_bytes=vmem_limit,
        ),
        cost_estimate=pl.CostEstimate(
            flops=2 * x2d.size, transcendentals=n_rows,
            bytes_accessed=2 * x2d.size * itemsize),
    )(s, ssq, x2d)
    return out


# ---------------------------------------------------------------------------
# Public wrapper.
# ---------------------------------------------------------------------------
def scale_norm(x, scalar=None, *, eps=1e-6, affine=True, tile_rows=None):
    """ScaleNorm over the last axis of x.

    x:      [..., hidden]
    scalar: ()-shaped learned parameter (ignored if affine=False)
    """
    orig_shape = x.shape
    hidden = orig_shape[-1]
    x2d = x.reshape(-1, hidden)
    n_rows = x2d.shape[0]
    itemsize = jnp.dtype(x.dtype).itemsize
    packing = _sublane_packing(x.dtype)
    block_budget, vmem_limit = _budgets()

    if affine:
        s = jnp.asarray(scalar, jnp.float32).reshape(1, 1)
    else:
        s = jnp.ones((1, 1), jnp.float32)

    # Very large hidden: even `packing` rows blow the per-block budget -> tile hidden.
    if tile_rows is None and packing * hidden * itemsize > block_budget:
        out = _scale_norm_two_pass(x2d, s, eps, block_budget, vmem_limit)
        return out.reshape(orig_shape)

    if tile_rows is None:
        tile_rows = _pick_tile_rows(n_rows, hidden, x.dtype, block_budget)

    grid = (pl.cdiv(n_rows, tile_rows),)

    out = pl.pallas_call(
        functools.partial(_scale_norm_kernel, eps=float(eps)),
        out_shape=jax.ShapeDtypeStruct((n_rows, hidden), x.dtype),
        grid_spec=pl.GridSpec(
            grid=grid,
            in_specs=[
                pl.BlockSpec(memory_space=pltpu.MemorySpace.SMEM),     # scalar param
                pl.BlockSpec((tile_rows, hidden), lambda i: (i, 0)),   # x tile
            ],
            out_specs=pl.BlockSpec((tile_rows, hidden), lambda i: (i, 0)),
        ),
        compiler_params=pltpu.CompilerParams(
            dimension_semantics=("parallel",),
            vmem_limit_bytes=vmem_limit,
        ),
        cost_estimate=pl.CostEstimate(
            flops=3 * x2d.size, transcendentals=n_rows,
            bytes_accessed=2 * x2d.size * itemsize),
    )(s, x2d)

    return out.reshape(orig_shape)


def scale_norm_reference(x, scalar, *, eps=1e-6, affine=True):
    ms = jnp.mean(jnp.square(x.astype(jnp.float32)), axis=-1, keepdims=True)
    xs = (jnp.float32(scalar) * x.astype(jnp.float32)) if affine else x.astype(jnp.float32)
    return (xs * jax.lax.rsqrt(ms + eps)).astype(x.dtype)


if __name__ == "__main__":
    key = jax.random.PRNGKey(0)
    batch, seq, hidden = 2, 8, 32
    x = jax.random.normal(key, (batch, seq, hidden), dtype=jnp.float32)

    # Deterministic parameter init, matching nn.init.constant_(scalar, 1.0)
    scalar = jnp.float32(1.0)

    y = jax.block_until_ready(scale_norm(x, scalar, eps=1e-6, affine=True))
    y_ref = scale_norm_reference(x, scalar, eps=1e-6, affine=True)
    assert y.shape == x.shape and y.dtype == x.dtype
    assert jnp.allclose(y, y_ref, atol=1e-5, rtol=1e-5)

    # Ragged (non-divisible) row count + affine=False path.
    x2 = jax.random.normal(jax.random.PRNGKey(1), (3, 5, hidden), dtype=jnp.float32)
    y2 = jax.block_until_ready(scale_norm(x2, None, eps=1e-6, affine=False, tile_rows=8))
    y2_ref = scale_norm_reference(x2, 1.0, eps=1e-6, affine=False)
    assert jnp.allclose(y2, y2_ref, atol=1e-5, rtol=1e-5)

    # Exercise the large-hidden two-pass path at small shapes (forced tile sizes),
    # including a ragged (non-multiple-of-128) hidden block with masking.
    hid3 = 160
    x3 = jax.random.normal(jax.random.PRNGKey(2), (2, 12, hid3), dtype=jnp.float32)
    bb, vl = _budgets()
    y3 = _scale_norm_two_pass(x3.reshape(-1, hid3), jnp.ones((1, 1), jnp.float32),
                              1e-6, bb, vl, tile_rows=8, tile_hidden=128)
    y3 = jax.block_until_ready(y3).reshape(x3.shape)
    y3_ref = scale_norm_reference(x3, 1.0, eps=1e-6, affine=True)
    assert jnp.allclose(y3, y3_ref, atol=1e-5, rtol=1e-5)

    print("KERNEL_OK")
</pallas_src>

<mosaic_0001>
module attributes {stable_mosaic.version = 11 : i64} {
  func.func @_scale_norm_kernel(%arg0: i32, %arg1: memref<1x1xf32, #tpu.memory_space<smem>>, %arg2: memref<16x32xf32, #tpu.memory_space<vmem>>, %arg3: memref<16x32xf32, #tpu.memory_space<vmem>>) attributes {dimension_semantics = [#tpu.dimension_semantics<parallel>], iteration_bounds = array<i64: 1>, scalar_prefetch = 0 : i64, scratch_operands = 0 : i64, tpu.core_type = #tpu.core_type<tc>, window_params = [{transform_indices = @transform_0, window_bounds = array<i64: 1, 1>}, {transform_indices = @transform_1, window_bounds = array<i64: 16, 32>}, {transform_indices = @transform_2, window_bounds = array<i64: 16, 32>}]} {
    %c0 = arith.constant 0 : index
    %c0_0 = arith.constant 0 : index
    %0 = vector.load %arg2[%c0, %c0_0] : memref<16x32xf32, #tpu.memory_space<vmem>>, vector<16x32xf32>
    %1 = arith.mulf %0, %0 : vector<16x32xf32>
    %cst = arith.constant dense<0.000000e+00> : vector<16xf32>
    %2 = vector.multi_reduction <add>, %1, %cst [1] : vector<16x32xf32> to vector<16xf32>
    %3 = vector.shape_cast %2 : vector<16xf32> to vector<16x1xf32>
    %cst_1 = arith.constant 3.200000e+01 : f32
    %4 = vector.broadcast %cst_1 : f32 to vector<16x1xf32>
    %5 = arith.divf %3, %4 : vector<16x1xf32>
    %c0_2 = arith.constant 0 : index
    %c0_3 = arith.constant 0 : index
    %6 = memref.load %arg1[%c0_2, %c0_3] : memref<1x1xf32, #tpu.memory_space<smem>>
    %cst_4 = arith.constant 9.99999997E-7 : f32
    %7 = vector.broadcast %cst_4 : f32 to vector<16x1xf32>
    %8 = arith.addf %5, %7 : vector<16x1xf32>
    %9 = math.rsqrt %8 : vector<16x1xf32>
    %10 = vector.broadcast %6 : f32 to vector<16x1xf32>
    %11 = arith.mulf %10, %9 : vector<16x1xf32>
    %12 = vector.broadcast %11 : vector<16x1xf32> to vector<16x32xf32>
    %13 = arith.mulf %0, %12 : vector<16x32xf32>
    %c0_5 = arith.constant 0 : index
    %c0_6 = arith.constant 0 : index
    %14 = vector.load %arg3[%c0_5, %c0_6] : memref<16x32xf32, #tpu.memory_space<vmem>>, vector<16x32xf32>
    tpu.vector_store %arg3[%c0_5, %c0_6], %13 {strides = array<i32>} : memref<16x32xf32, #tpu.memory_space<vmem>>, vector<16x32xf32>,
    return
  }
  func.func @transform_0(%arg0: i32) -> (i32, i32) {
    %c0_i32 = arith.constant 0 : i32
    %c0_i32_0 = arith.constant 0 : i32
    %c0_i32_1 = arith.constant 0 : i32
    return %c0_i32, %c0_i32_0 : i32, i32
  }
  func.func @transform_1(%arg0: i32) -> (i32, i32) {
    %c0_i32 = arith.constant 0 : i32
    %c0_i32_0 = arith.constant 0 : i32
    return %arg0, %c0_i32 : i32, i32
  }
  func.func @transform_2(%arg0: i32) -> (i32, i32) {
    %c0_i32 = arith.constant 0 : i32
    %c0_i32_0 = arith.constant 0 : i32
    return %arg0, %c0_i32 : i32, i32
  }
}

</mosaic_0001>

<llo_original>
// kernel: tpu_custom_call.1
$region0: #{tpu_custom_call.1}
  #allocation0 [shape = 'u32[]', space=smem, size = 0x4, offset = 0x4, fixed_abs, tag = 'smem constant byte address 0x4 - core index']
  #allocation1 [shape = 'u32[72,128]{1,0:T(1,128)}', space=vmem, size = 0x9000, scoped, tag = 'internal scratch']
  #allocation2 [shape = 'f32[1,1]{1,0:T(1,128)S(6)}', space=smem, size = 0x200, scoped, tag = 'scoped memory for tpu_custom_call.1']
  %s0 = inlined_call_operand.<no memory space> [shape: f32[1,1], index: 0, kind: input, shape index: {}]
  %s1 = inlined_call_operand.hbm [shape: f32[16,32], index: 1, kind: input, shape index: {}]
  %s2 = inlined_call_operand.hbm [shape: f32[16,32], index: 2, kind: output, shape index: {}]
  %s3 = sld [smem:[#allocation0]]
  $region22: #{tpu_custom_call.1} parent=0
    _
  %s5 = ssub.s32 1, %s3
  %s6 = scalar_select 0, %s5, %s3
  %7 = sst [smem:[#allocation2]] %s0
  $region1: #{tpu_custom_call.1} parent=0
    #allocation3 [shape = 'u8[8192]{0}', space=vmem, size = 0x2000, scoped, tag = 'input window, operand 1, single buffered']
    #allocation4 [shape = 's32[1]{0}', space=sflag, size = 0x4, scoped, tag = 'scoped memory for tpu_custom_call.1']
    #allocation5 [shape = 's32[1]{0}', space=sflag, size = 0x4, scoped, tag = 'scoped memory for tpu_custom_call.1']
    #allocation6 [shape = 'u8[8192]{0}', space=vmem, size = 0x2000, scoped, tag = 'output window, operand 0, single buffered']
    %8 = vsyncpa [#allocation4], 0
    %9 = vsyncpa [#allocation5], 0
    // Predicated region
    $region2: #{tpu_custom_call.1} parent=1 // pred_check
      _
    $region3: #{tpu_custom_call.1} parent=1 // pred_check_branch
      %11 = sbr.rel (0) target = $region5
    $region4: #{tpu_custom_call.1} parent=1 // pred_region
      _
    $region5: #{tpu_custom_call.1} parent=1 // pred_fallthru
      _
    // Predicated region
    $region6: #{tpu_custom_call.1} parent=1 // pred_check
      _
    $region7: #{tpu_custom_call.1} parent=1 // pred_check_branch
      %13 = sbr.rel (0) target = $region9
    $region8: #{tpu_custom_call.1} parent=1 // pred_region
      %15 = vsyncadd [#allocation4], 0
      %s16 = sshll.u32 %s1, 4
      %s17 = int_to_ptr.hbm [resolvable:$true] %s16
      %s18 = sshll.u32 [#allocation3], 4
      %s19 = int_to_ptr.vmem [resolvable:$true] %s18
      %24 = dma.hbm_to_vmem [thread:$0]  %s17, 256, %s19, [#allocation4], 128, 128, 8
    $region9: #{tpu_custom_call.1} parent=1 // pred_fallthru
      _
    // Predicated region
    $region10: #{tpu_custom_call.1} parent=1 // pred_check
      _
    $region11: #{tpu_custom_call.1} parent=1 // pred_check_branch
      %26 = sbr.rel (0) target = $region13
    $region12: #{tpu_custom_call.1} parent=1 // pred_region
      %28 = dma.done [#allocation4], 256
    $region13: #{tpu_custom_call.1} parent=1 // pred_fallthru
      _
    %v29 = vld [vmem:[#allocation3] sm:$0xff]
    %v30 = vld [vmem:[#allocation3 + $0x8] sm:$0xff]
    %v31 = vmul.f32 %v29, %v29
    %v32 = vmul.f32 %v30, %v30
    %vm33 = vcmask 261120
    %v34 = vsel %vm33, %v31, 0.0
    %35 = vadd.xlane.f32.xlu0 %v34
    %v36 = vpop.xlane.xlu0 %35
    %v37 = vsel %vm33, %v32, 0.0
    %38 = vadd.xlane.f32.xlu0 %v37
    %v39 = vpop.xlane.xlu0 %38
    %v40 = vrcp.pop 32.0
    %v41 = vmul.f32 32.0, %v40
    %v42 = vsub.f32 1.0, %v41
    %v43 = vmul.f32 %v40, %v42
    %v44 = vadd.f32 %v40, %v43
    %vm45 = vweird.f32 %v40
    %v46 = vsel %vm45, %v40, %v44
    %v47 = vmul.f32 %v36, %v46
    %v48 = vmul.f32 %v39, %v46
    %s49 = sld [smem:[#allocation2]]
    %v50 = vadd.f32 %v47, 1e-06
    %v51 = vadd.f32 %v48, 1e-06
    %v52 = vrsqrt.pop %v50
    %v53 = vmul.f32 %v52, %v50
    %v54 = vmul.f32 %v53, %v52
    %v55 = vmul.f32 0.5, %v54
    %v56 = vsub.f32 1.5, %v55
    %v57 = vmul.f32 %v52, %v56
    %vm58 = vweird.f32 %v50
    %vm59 = vweird.f32 %v52
    %vm60 = vmor %vm58, %vm59
    %v61 = vsel %vm60, %v52, %v57
    %v62 = vrsqrt.pop %v51
    %v63 = vmul.f32 %v62, %v51
    %v64 = vmul.f32 %v63, %v62
    %v65 = vmul.f32 0.5, %v64
    %v66 = vsub.f32 1.5, %v65
    %v67 = vmul.f32 %v62, %v66
    %vm68 = vweird.f32 %v51
    %vm69 = vweird.f32 %v62
    %vm70 = vmor %vm68, %vm69
    %v71 = vsel %vm70, %v62, %v67
    %v72 = vstv %s49
    %v73 = vmul.f32 %v72, %v61
    %v74 = vmul.f32 %v72, %v71
    %v75 = vmul.f32 %v29, %v73
    %v76 = vmul.f32 %v30, %v74
    %77 = vst.msk [vmem:[#allocation6] sm:$0xff] %vm33, %v75
    %78 = vst.msk [vmem:[#allocation6 + $0x8] sm:$0xff] %vm33, %v76
    // Predicated region
    $region14: #{tpu_custom_call.1} parent=1 // pred_check
      _
    $region15: #{tpu_custom_call.1} parent=1 // pred_check_branch
      %80 = sbr.rel (0) target = $region17
    $region16: #{tpu_custom_call.1} parent=1 // pred_region
      %82 = vsyncadd [#allocation5], 0
      %s83 = sshll.u32 [#allocation6], 4
      %s84 = int_to_ptr.vmem [resolvable:$true] %s83
      %s85 = sshll.u32 %s2, 4
      %s86 = int_to_ptr.hbm [resolvable:$true] %s85
      %91 = dma.vmem_to_hbm [thread:$0]  %s84, 256, %s86, [#allocation5], 128, 128, 8
    $region17: #{tpu_custom_call.1} parent=1 // pred_fallthru
      _
    // Predicated region
    $region18: #{tpu_custom_call.1} parent=1 // pred_check
      _
    $region19: #{tpu_custom_call.1} parent=1 // pred_check_branch
      %93 = sbr.rel (0) target = $region21
    $region20: #{tpu_custom_call.1} parent=1 // pred_region
      %95 = dma.done [#allocation5], 256
    $region21: #{tpu_custom_call.1} parent=1 // pred_fallthru
      _
    %96 = vsyncpa [#allocation4], 1
    %97 = vsyncpa [#allocation5], 1

</llo_original>
